<compile_context>
chip_gen: v7x
topology: tpu7x:2x2x1
jax: 0.10.0
libtpu: 0.0.40
codegen_flags: <defaults>
</compile_context>

<pallas_src>
import math
from functools import partial

import jax
import jax.numpy as jnp
from jax.experimental import pallas as pl
from jax.experimental.pallas import tpu as pltpu

_SQRT_HALF = math.sqrt(0.5)


def _concat_kernel(x_ref, res_ref, o_ref, *, hidden):
    """i == 1: out = concat([x, res], -1) via two lane-sliced stores."""
    o_ref[:, :hidden] = x_ref[...]
    o_ref[:, hidden:] = res_ref[...]


def _fuse_full_kernel(x_ref, res_ref, o_ref, *, hidden):
    """i > 1 (generic seam): out[:, :H] = (res[:, :H] + x) * sqrt(0.5); tail copied."""
    scale = jnp.asarray(_SQRT_HALF, dtype=o_ref.dtype)
    o_ref[:, :hidden] = ((res_ref[:, :hidden] + x_ref[...]) * scale).astype(o_ref.dtype)
    o_ref[:, hidden:] = res_ref[:, hidden:]


def _fuse_head_kernel(x_ref, res_head_ref, o_head_ref):
    """i > 1 with a lane-aligned seam: only the first H columns are streamed.

    The res[..., H:] tail is never read or written by the kernel; it stays in
    place in HBM because the output buffer is aliased to `res`.
    """
    scale = jnp.asarray(_SQRT_HALF, dtype=o_head_ref.dtype)
    o_head_ref[...] = ((res_head_ref[...] + x_ref[...]) * scale).astype(o_head_ref.dtype)


def _pick_row_tile(rows: int, target: int = 512) -> int:
    """Row-tile size: full extent if small, else a multiple of 8 near `target`."""
    if rows <= target:
        return rows
    return max((target // 8) * 8, 8)


def augmented_residual_connection(x: jax.Array, res: jax.Array, i: int) -> jax.Array:
    """Pallas port of AugmentedResidualConnection.forward.

    Args:
      x:   (B, S, H)   output of the previous block.
      res: (B, S, E)        if i == 1
           (B, S, H + E)    if i  > 1   (first H columns = previous-two-block output)
      i:   layer index (static Python int).

    Returns:
      (B, S, H + E). For i > 1 the `res` buffer may be reused in place
      (donate `res` for the full HBM-traffic saving).
    """
    B, S, H = x.shape
    assert res.shape[:2] == (B, S)
    assert res.dtype == x.dtype, "x and res must share a dtype"
    D_res = res.shape[-1]
    rows = B * S

    x2 = x.reshape(rows, H)
    res2 = res.reshape(rows, D_res)

    tm = _pick_row_tile(rows)
    grid = (pl.cdiv(rows, tm),)
    itemsize = jnp.dtype(x.dtype).itemsize

    if i == 1:
        d_out = H + D_res
        kernel = partial(_concat_kernel, hidden=H)
        in_specs = [
            pl.BlockSpec((tm, H), lambda r: (r, 0)),
            pl.BlockSpec((tm, D_res), lambda r: (r, 0)),
        ]
        out_specs = pl.BlockSpec((tm, d_out), lambda r: (r, 0))
        aliases = {}
        block_bytes = tm * (H + D_res + d_out) * itemsize
    else:
        assert D_res >= H, "res must carry at least hidden_size features when i > 1"
        d_out = D_res
        aliases = {1: 0}  # reuse the res buffer as the output
        if H % 128 == 0:
            # Lane-aligned seam: block shapes only cover the first H columns.
            kernel = _fuse_head_kernel
            in_specs = [
                pl.BlockSpec((tm, H), lambda r: (r, 0)),
                pl.BlockSpec((tm, H), lambda r: (r, 0)),
            ]
            out_specs = pl.BlockSpec((tm, H), lambda r: (r, 0))
            block_bytes = tm * 3 * H * itemsize
        else:
            # TODO(synk): pad H (and E) to multiples of 128 upstream so this
            # branch (which still streams the untouched tail) is never taken.
            kernel = partial(_fuse_full_kernel, hidden=H)
            in_specs = [
                pl.BlockSpec((tm, H), lambda r: (r, 0)),
                pl.BlockSpec((tm, D_res), lambda r: (r, 0)),
            ]
            out_specs = pl.BlockSpec((tm, d_out), lambda r: (r, 0))
            block_bytes = tm * (H + D_res + d_out) * itemsize

    # Double-buffered blocks plus headroom; stay well inside scoped VMEM on
    # every generation (v5e 16 MiB / v6e 32 MiB / v7x 32 MiB defaults).
    vmem_limit = int(min(max(4 * block_bytes, 4 << 20), 32 << 20))

    out2 = pl.pallas_call(
        kernel,
        out_shape=jax.ShapeDtypeStruct((rows, d_out), x.dtype),
        grid_spec=pltpu.PrefetchScalarGridSpec(
            num_scalar_prefetch=0,
            grid=grid,
            in_specs=in_specs,
            out_specs=out_specs,
        ),
        input_output_aliases=aliases,
        compiler_params=pltpu.CompilerParams(
            dimension_semantics=("parallel",),
            vmem_limit_bytes=vmem_limit,
        ),
    )(x2, res2)

    return out2.reshape(B, S, d_out)


def _reference(x, res, i):
    """Pure-JAX reference mirroring the PyTorch forward."""
    if i == 1:
        return jnp.concatenate([x, res], axis=-1)
    hidden = x.shape[-1]
    fused = (res[..., :hidden] + x) * math.sqrt(0.5)
    return jnp.concatenate([fused, res[..., hidden:]], axis=-1)


if __name__ == "__main__":
    key = jax.random.PRNGKey(0)
    k1, k2, k3, k4, k5 = jax.random.split(key, 5)

    B, S, H, E = 2, 8, 32, 32  # batch, seq_len, hidden_size, embedding_size

    x = jax.random.normal(k1, (B, S, H), dtype=jnp.float32)

    # --- Case i == 1: res is the embedding output (B, S, E) ---
    res1 = jax.random.normal(k2, (B, S, E), dtype=jnp.float32)
    ref1 = _reference(x, res1, 1)
    out1 = augmented_residual_connection(x, res1, i=1)
    jax.block_until_ready(out1)
    assert out1.shape == (B, S, H + E)
    assert jnp.allclose(out1, ref1, atol=1e-6, rtol=1e-6)

    # --- Case i > 1, lane-unaligned hidden size (generic fused path) ---
    res2 = jax.random.normal(k3, (B, S, H + E), dtype=jnp.float32)
    ref2 = _reference(x, res2, 2)
    out2 = augmented_residual_connection(x, res2, i=2)
    jax.block_until_ready(out2)
    assert out2.shape == (B, S, H + E)
    assert jnp.allclose(out2, ref2, atol=1e-6, rtol=1e-6)

    # --- Case i > 1, lane-aligned hidden size (tail-skipping aliased path) ---
    H2, E2 = 128, 128
    xa = jax.random.normal(k4, (B, S, H2), dtype=jnp.float32)
    resa = jax.random.normal(k5, (B, S, H2 + E2), dtype=jnp.float32)
    ref3 = _reference(xa, resa, 3)
    out3 = augmented_residual_connection(xa, resa, i=3)
    jax.block_until_ready(out3)
    assert out3.shape == (B, S, H2 + E2)
    assert jnp.allclose(out3, ref3, atol=1e-6, rtol=1e-6)

    print("KERNEL_OK")
</pallas_src>

<mosaic_0001>
module attributes {stable_mosaic.version = 11 : i64} {
  func.func @_concat_kernel(%arg0: i32, %arg1: memref<16x32xf32, #tpu.memory_space<vmem>>, %arg2: memref<16x32xf32, #tpu.memory_space<vmem>>, %arg3: memref<16x64xf32, #tpu.memory_space<vmem>>) attributes {dimension_semantics = [#tpu.dimension_semantics<parallel>], iteration_bounds = array<i64: 1>, scalar_prefetch = 0 : i64, scratch_operands = 0 : i64, tpu.core_type = #tpu.core_type<tc>, window_params = [{transform_indices = @transform_0, window_bounds = array<i64: 16, 32>}, {transform_indices = @transform_1, window_bounds = array<i64: 16, 32>}, {transform_indices = @transform_2, window_bounds = array<i64: 16, 64>}]} {
    %c0 = arith.constant 0 : index
    %c0_0 = arith.constant 0 : index
    %0 = vector.load %arg1[%c0, %c0_0] : memref<16x32xf32, #tpu.memory_space<vmem>>, vector<16x32xf32>
    %c0_1 = arith.constant 0 : index
    %c0_2 = arith.constant 0 : index
    %1 = vector.load %arg3[%c0_1, %c0_2] : memref<16x64xf32, #tpu.memory_space<vmem>>, vector<16x32xf32>
    tpu.vector_store %arg3[%c0_1, %c0_2], %0 {strides = array<i32>} : memref<16x64xf32, #tpu.memory_space<vmem>>, vector<16x32xf32>,
    %c0_3 = arith.constant 0 : index
    %c0_4 = arith.constant 0 : index
    %2 = vector.load %arg2[%c0_3, %c0_4] : memref<16x32xf32, #tpu.memory_space<vmem>>, vector<16x32xf32>
    %c0_5 = arith.constant 0 : index
    %c32 = arith.constant 32 : index
    %3 = vector.load %arg3[%c0_5, %c32] : memref<16x64xf32, #tpu.memory_space<vmem>>, vector<16x32xf32>
    tpu.vector_store %arg3[%c0_5, %c32], %2 {strides = array<i32>} : memref<16x64xf32, #tpu.memory_space<vmem>>, vector<16x32xf32>,
    return
  }
  func.func @transform_0(%arg0: i32) -> (i32, i32) {
    %c0_i32 = arith.constant 0 : i32
    %c0_i32_0 = arith.constant 0 : i32
    return %arg0, %c0_i32 : i32, i32
  }
  func.func @transform_1(%arg0: i32) -> (i32, i32) {
    %c0_i32 = arith.constant 0 : i32
    %c0_i32_0 = arith.constant 0 : i32
    return %arg0, %c0_i32 : i32, i32
  }
  func.func @transform_2(%arg0: i32) -> (i32, i32) {
    %c0_i32 = arith.constant 0 : i32
    %c0_i32_0 = arith.constant 0 : i32
    return %arg0, %c0_i32 : i32, i32
  }
}

</mosaic_0001>

<llo_original>
// kernel: tpu_custom_call.1
$region0: #{tpu_custom_call.1}
  #allocation0 [shape = 'u32[]', space=smem, size = 0x4, offset = 0x4, fixed_abs, tag = 'smem constant byte address 0x4 - core index']
  #allocation1 [shape = 'u32[144,128]{1,0:T(1,128)}', space=vmem, size = 0x12000, scoped, tag = 'internal scratch']
  %s0 = inlined_call_operand.hbm [shape: f32[16,32], index: 0, kind: input, shape index: {}]
  %s1 = inlined_call_operand.hbm [shape: f32[16,32], index: 1, kind: input, shape index: {}]
  %s2 = inlined_call_operand.hbm [shape: f32[16,64], index: 2, kind: output, shape index: {}]
  %s3 = sld [smem:[#allocation0]]
  $region26: #{tpu_custom_call.1} parent=0
    _
  %s5 = ssub.s32 1, %s3
  %s6 = scalar_select 0, %s5, %s3
  $region1: #{tpu_custom_call.1} parent=0
    #allocation2 [shape = 'u8[8192]{0}', space=vmem, size = 0x2000, scoped, tag = 'input window, operand 0, single buffered']
    #allocation3 [shape = 's32[1]{0}', space=sflag, size = 0x4, scoped, tag = 'scoped memory for tpu_custom_call.1']
    #allocation4 [shape = 's32[1]{0}', space=sflag, size = 0x4, scoped, tag = 'scoped memory for tpu_custom_call.1']
    #allocation5 [shape = 'u8[8192]{0}', space=vmem, size = 0x2000, scoped, tag = 'input window, operand 1, single buffered']
    #allocation6 [shape = 's32[1]{0}', space=sflag, size = 0x4, scoped, tag = 'scoped memory for tpu_custom_call.1']
    #allocation7 [shape = 'u8[8192]{0}', space=vmem, size = 0x2000, scoped, tag = 'output window, operand 0, single buffered']
    %7 = vsyncpa [#allocation3], 0
    %8 = vsyncpa [#allocation6], 0
    %9 = vsyncpa [#allocation4], 0
    // Predicated region
    $region2: #{tpu_custom_call.1} parent=1 // pred_check
      _
    $region3: #{tpu_custom_call.1} parent=1 // pred_check_branch
      %11 = sbr.rel (0) target = $region5
    $region4: #{tpu_custom_call.1} parent=1 // pred_region
      %s13 = ssub.s32 256, 256
      %14 = vsyncadd [#allocation3], %s13
      %s15 = sshll.u32 [#allocation2], 4
      %s16 = int_to_ptr.vmem [resolvable:$true] %s15
      %21 = dma.hbm_to_vmem [thread:$0]  %s0, 256, %s16, [#allocation3], 128, 128, 8
    $region5: #{tpu_custom_call.1} parent=1 // pred_fallthru
      _
    // Predicated region
    $region6: #{tpu_custom_call.1} parent=1 // pred_check
      _
    $region7: #{tpu_custom_call.1} parent=1 // pred_check_branch
      %23 = sbr.rel (0) target = $region9
    $region8: #{tpu_custom_call.1} parent=1 // pred_region
      %s25 = ssub.s32 256, 256
      %26 = vsyncadd [#allocation6], %s25
      %s27 = sshll.u32 [#allocation5], 4
      %s28 = int_to_ptr.vmem [resolvable:$true] %s27
      %33 = dma.hbm_to_vmem [thread:$0]  %s1, 256, %s28, [#allocation6], 128, 128, 8
    $region9: #{tpu_custom_call.1} parent=1 // pred_fallthru
      _
    // Predicated region
    $region10: #{tpu_custom_call.1} parent=1 // pred_check
      _
    $region11: #{tpu_custom_call.1} parent=1 // pred_check_branch
      %35 = sbr.rel (0) target = $region13
    $region12: #{tpu_custom_call.1} parent=1 // pred_region
      %36 = dma.done [#allocation3], 256
    $region13: #{tpu_custom_call.1} parent=1 // pred_fallthru
      _
    // Predicated region
    $region14: #{tpu_custom_call.1} parent=1 // pred_check
      _
    $region15: #{tpu_custom_call.1} parent=1 // pred_check_branch
      %38 = sbr.rel (0) target = $region17
    $region16: #{tpu_custom_call.1} parent=1 // pred_region
      %39 = dma.done [#allocation6], 256
    $region17: #{tpu_custom_call.1} parent=1 // pred_fallthru
      _
    %v40 = vld [vmem:[#allocation2] sm:$0xff]
    %v41 = vld [vmem:[#allocation2 + $0x8] sm:$0xff]
    %vm42 = vcmask 261120
    %43 = vst.msk [vmem:[#allocation7] sm:$0xff] %vm42, %v40
    %44 = vst.msk [vmem:[#allocation7 + $0x8] sm:$0xff] %vm42, %v41
    %v45 = vld [vmem:[#allocation5] sm:$0xff]
    %v46 = vld [vmem:[#allocation5 + $0x8] sm:$0xff]
    %49 = vrot.lane.b32.xlu0 %v45, 32
    %v50 = vpop.permute.xlu0 %49
    %51 = vrot.lane.b32.xlu0 %v46, 32
    %v52 = vpop.permute.xlu0 %51
    %vm55 = vcmask 523520
    %56 = vst.msk [vmem:[#allocation7] sm:$0xff] %vm55, %v50
    %57 = vst.msk [vmem:[#allocation7 + $0x8] sm:$0xff] %vm55, %v52
    // Predicated region
    $region18: #{tpu_custom_call.1} parent=1 // pred_check
      _
    $region19: #{tpu_custom_call.1} parent=1 // pred_check_branch
      %59 = sbr.rel (0) target = $region21
    $region20: #{tpu_custom_call.1} parent=1 // pred_region
      %s61 = ssub.s32 256, 256
      %62 = vsyncadd [#allocation4], %s61
      %s63 = sshll.u32 [#allocation7], 4
      %s64 = int_to_ptr.vmem [resolvable:$true] %s63
      %69 = dma.vmem_to_hbm [thread:$0]  %s64, 256, %s2, [#allocation4], 128, 128, 8
    $region21: #{tpu_custom_call.1} parent=1 // pred_fallthru
      _
    // Predicated region
    $region22: #{tpu_custom_call.1} parent=1 // pred_check
      _
    $region23: #{tpu_custom_call.1} parent=1 // pred_check_branch
      %71 = sbr.rel (0) target = $region25
    $region24: #{tpu_custom_call.1} parent=1 // pred_region
      %72 = dma.done [#allocation4], 256
    $region25: #{tpu_custom_call.1} parent=1 // pred_fallthru
      _
    %73 = vsyncpa [#allocation3], 1
    %74 = vsyncpa [#allocation6], 1
    %75 = vsyncpa [#allocation4], 1

</llo_original>
